<compile_context>
chip_gen: v7x
topology: tpu7x:2x2x1
jax: 0.10.0
libtpu: 0.0.40
codegen_flags: <defaults>
</compile_context>

<pallas_src>
import functools

import jax
import jax.numpy as jnp
from jax.experimental import pallas as pl
from jax.experimental.pallas import tpu as pltpu


def _round_up(x, m):
    return ((x + m - 1) // m) * m


# --------------------------------------------------------------------------
# Kernel
# --------------------------------------------------------------------------
def gating_kernel(x_ref, w1_ref, b1_ref, out_ref, acc_ref, *,
                  inv_hw, hw, tile_hw, needs_mask):
    # x_ref:  (TILE_B, C, TILE_HW)  input activations (f32 or bf16)
    # w1_ref: (C, Gp)  f32          fc1.weight.T, zero-padded to Gp lanes
    # b1_ref: (1, Gp)  f32          fc1.bias, zero-padded
    # out_ref:(TILE_B, Gp) f32      STE forward output (padded gates are 0)
    # acc_ref:(TILE_B, C)  f32      running spatial-sum accumulator (scratch)
    k = pl.program_id(1)

    @pl.when(k == 0)
    def _():
        acc_ref[...] = jnp.zeros_like(acc_ref)

    x = x_ref[...]
    if needs_mask:
        # The last spatial chunk extends past HW; zero OOB lanes so they never
        # contaminate the pooled mean (cheap VPU select, hidden under DMA).
        lane = jax.lax.broadcasted_iota(jnp.int32, (1, 1, tile_hw), 2)
        valid = hw - k * tile_hw          # >= tile_hw on all but the last step
        x = jnp.where(lane < valid, x, jnp.zeros((), x.dtype))

    # Fused upcast: accumulate in f32 regardless of input dtype (bf16 ok),
    # without materializing an f32 copy of the whole tile.
    acc_ref[...] += jnp.sum(x, axis=-1, dtype=jnp.float32)

    @pl.when(k == pl.num_programs(1) - 1)
    def _():
        pooled = acc_ref[...] * inv_hw                                    # (TILE_B, C)
        logits = jnp.dot(pooled, w1_ref[...],
                         preferred_element_type=jnp.float32) + b1_ref[...]  # (TILE_B, Gp)
        out_ref[...] = (logits > 0).astype(jnp.float32)                   # STE forward


# --------------------------------------------------------------------------
# Tiling heuristics
# --------------------------------------------------------------------------
def _choose_tiles(B, C, HW, itemsize, per_buffer_budget):
    """Pick (tile_b, tile_hw) so one input tile stays within per_buffer_budget.

    Constraints honoured:
      * output block (tile_b, Gp): tile_b is a multiple of 8 or equals B.
      * input block (tile_b, C, tile_hw): tile_hw is a multiple of 128 or HW.
      * >= 2 batch tiles whenever B > 8 (v7x megacore utilization).
      * minimum contiguous DMA run per (b, c) row of ~2 KiB when spatially
        tiling (shrink tile_b before tile_hw).
    """
    # Minimum spatial tile: >= 2 KiB contiguous per row, lane-dense.
    min_hw = max(128, _round_up(max(1, 2048 // itemsize), 128))
    bytes_per_b_full = C * HW * itemsize

    # Batch-tile upper bound: keep >= 2 batch tiles when B > 8 so the
    # "parallel" batch axis can shard across both v7x TensorCores.
    if B > 8:
        tile_b_cap = max(8, _round_up(-(-B // 2), 8))   # round_up(cdiv(B,2), 8)
    else:
        tile_b_cap = B

    # First try to keep the full spatial extent (fully contiguous rows).
    tile_b = per_buffer_budget // max(1, bytes_per_b_full)
    if tile_b >= tile_b_cap:
        tile_b = tile_b_cap
    elif tile_b >= 8:
        tile_b = (tile_b // 8) * 8
    else:
        tile_b = min(B, 8)        # minimum legal batch tile (sublane rule)

    tile_hw = HW
    if tile_b * bytes_per_b_full > per_buffer_budget and HW > min_hw:
        # Budget exceeded even at the minimum batch tile -> spatial tiling.
        tile_b = min(B, 8)
        tile_hw = per_buffer_budget // max(1, tile_b * C * itemsize)
        tile_hw = max(min_hw, (tile_hw // 128) * 128)
        tile_hw = min(tile_hw, HW)
    # else: either it fits, or HW <= min_hw (huge C, tiny spatial) -- keep the
    # full spatial extent and let the footprint-derived vmem_limit absorb it.

    return int(tile_b), int(tile_hw)


# --------------------------------------------------------------------------
# Wrapper
# --------------------------------------------------------------------------
def prepare_fc1_params(w1, b1):
    """Pad/transpose fc1 params once (call at module init, not per forward).

    w1: (out_gates, in_chs) PyTorch layout; b1: (out_gates,).
    Returns (w1_t (C, Gp) f32, b1_p (1, Gp) f32, G).
    """
    G, C = int(w1.shape[0]), int(w1.shape[1])
    Gp = _round_up(G, 128)
    w1_t = jnp.zeros((C, Gp), jnp.float32).at[:, :G].set(
        jnp.asarray(w1, jnp.float32).T)
    b1_p = jnp.zeros((1, Gp), jnp.float32).at[:, :G].set(
        jnp.asarray(b1, jnp.float32).reshape(1, G))
    return w1_t, b1_p, G


def gating_nw_forward(x_nchw, w1, b1, *, per_buffer_budget=12 << 20):
    """Eval-mode GatingNW forward.

    x_nchw: (B, C, H, W), f32 or bf16 (bf16 is streamed as-is -- no wrapper
    cast -- halving HBM traffic on this read-bound op).
    w1: (out_gates, in_chs); b1: (out_gates,).
    Returns (B, out_gates) f32 of {0.0, 1.0}.
    """
    B, C, H, W = x_nchw.shape
    HW = H * W
    x_flat = x_nchw.reshape(B, C, HW)
    itemsize = jnp.dtype(x_flat.dtype).itemsize

    w1_t, b1_p, G = prepare_fc1_params(w1, b1)
    Gp = w1_t.shape[1]

    tile_b, tile_hw = _choose_tiles(B, C, HW, itemsize, per_buffer_budget)
    grid = (pl.cdiv(B, tile_b), pl.cdiv(HW, tile_hw))
    needs_mask = (HW % tile_hw) != 0

    # VMEM limit derived from the actual double-buffered footprint.
    x_tile_bytes = tile_b * C * tile_hw * itemsize
    w_bytes = C * Gp * 4
    b_bytes = Gp * 4
    out_tile_bytes = tile_b * Gp * 4
    acc_bytes = tile_b * C * 4
    footprint = 2 * (x_tile_bytes + w_bytes + b_bytes + out_tile_bytes) + acc_bytes
    vmem_limit = min(128 << 20, max(8 << 20, int(footprint * 1.25) + (2 << 20)))

    kernel = functools.partial(
        gating_kernel,
        inv_hw=float(1.0 / HW),
        hw=HW,
        tile_hw=tile_hw,
        needs_mask=needs_mask,
    )

    out_padded = pl.pallas_call(
        kernel,
        out_shape=jax.ShapeDtypeStruct((B, Gp), jnp.float32),
        grid_spec=pltpu.PrefetchScalarGridSpec(
            num_scalar_prefetch=0,
            grid=grid,
            in_specs=[
                pl.BlockSpec((tile_b, C, tile_hw), lambda i, k: (i, 0, k)),
                pl.BlockSpec((C, Gp), lambda i, k: (0, 0)),
                pl.BlockSpec((1, Gp), lambda i, k: (0, 0)),
            ],
            out_specs=pl.BlockSpec((tile_b, Gp), lambda i, k: (i, 0)),
            scratch_shapes=[pltpu.VMEM((tile_b, C), jnp.float32)],
        ),
        compiler_params=pltpu.CompilerParams(
            dimension_semantics=("parallel", "arbitrary"),
            vmem_limit_bytes=vmem_limit,
        ),
        cost_estimate=pl.CostEstimate(
            flops=B * C * HW + 2 * B * C * Gp,
            transcendentals=0,
            bytes_accessed=B * C * HW * itemsize + w_bytes + b_bytes + B * Gp * 4,
        ),
    )(x_flat, w1_t, b1_p)

    return out_padded[:, :G]


# --------------------------------------------------------------------------
# Reference + check
# --------------------------------------------------------------------------
def _reference(x, w1, b1):
    pooled = jnp.mean(x.astype(jnp.float32), axis=(2, 3))
    logits = pooled @ jnp.asarray(w1, jnp.float32).T + jnp.asarray(b1, jnp.float32)
    return logits, (logits > 0).astype(jnp.float32)


def _check(out, logits_ref, ref, tol=1e-4):
    # Tolerance-aware: only compare gates whose logits are safely off the
    # (x > 0) decision boundary (tiled accumulation order can differ).
    assert out.shape == ref.shape
    stable = jnp.abs(logits_ref) > tol
    assert bool(jnp.all(jnp.where(stable, out == ref, True)))


if __name__ == "__main__":
    key = jax.random.PRNGKey(0)

    # --- Test 1: small shapes consistent with the module (single tile) -----
    B, C, H, W, G = 2, 4, 16, 16, 8
    kx, kw, kb, key = jax.random.split(key, 4)
    x = jax.random.normal(kx, (B, C, H, W), dtype=jnp.float32)
    bound = 1.0 / jnp.sqrt(jnp.float32(C))
    w1 = jax.random.uniform(kw, (G, C), minval=-bound, maxval=bound, dtype=jnp.float32)
    b1 = jax.random.uniform(kb, (G,), minval=-bound, maxval=bound, dtype=jnp.float32)

    out = jax.block_until_ready(gating_nw_forward(x, w1, b1))
    logits_ref, ref = _reference(x, w1, b1)
    _check(out, logits_ref, ref)

    # --- Test 2: non-divisible spatial extent + batch boundary -------------
    # HW = 28*28 = 784 (not a multiple of 128); tiny budget -> tile_b=8,
    # tile_hw=512, grid (2, 2): exercises the lane-mask path on the trailing
    # spatial chunk and the masked-store batch boundary (B=10, last tile has
    # 2 valid rows).
    B2, C2, H2, W2, G2 = 10, 8, 28, 28, 8
    kx, kw, kb, key = jax.random.split(key, 4)
    x2 = jax.random.normal(kx, (B2, C2, H2, W2), dtype=jnp.float32)
    bound2 = 1.0 / jnp.sqrt(jnp.float32(C2))
    w12 = jax.random.uniform(kw, (G2, C2), minval=-bound2, maxval=bound2, dtype=jnp.float32)
    b12 = jax.random.uniform(kb, (G2,), minval=-bound2, maxval=bound2, dtype=jnp.float32)

    out2 = jax.block_until_ready(
        gating_nw_forward(x2, w12, b12, per_buffer_budget=64 * 1024))
    logits_ref2, ref2 = _reference(x2, w12, b12)
    _check(out2, logits_ref2, ref2)

    # --- Test 3: bf16 streaming path (f32-fused accumulation) --------------
    B3, C3, H3, W3, G3 = 4, 8, 16, 16, 8
    kx, kw, kb, key = jax.random.split(key, 4)
    x3 = jax.random.normal(kx, (B3, C3, H3, W3), dtype=jnp.float32).astype(jnp.bfloat16)
    bound3 = 1.0 / jnp.sqrt(jnp.float32(C3))
    w13 = jax.random.uniform(kw, (G3, C3), minval=-bound3, maxval=bound3, dtype=jnp.float32)
    b13 = jax.random.uniform(kb, (G3,), minval=-bound3, maxval=bound3, dtype=jnp.float32)

    out3 = jax.block_until_ready(gating_nw_forward(x3, w13, b13))
    logits_ref3, ref3 = _reference(x3, w13, b13)
    _check(out3, logits_ref3, ref3, tol=1e-3)

    print("KERNEL_OK")
</pallas_src>

<mosaic_0001>
module attributes {stable_mosaic.version = 11 : i64} {
  func.func @gating_kernel(%arg0: i32, %arg1: i32, %arg2: memref<2x4x256xf32, #tpu.memory_space<vmem>>, %arg3: memref<4x128xf32, #tpu.memory_space<vmem>>, %arg4: memref<1x128xf32, #tpu.memory_space<vmem>>, %arg5: memref<2x128xf32, #tpu.memory_space<vmem>>, %arg6: memref<2x4xf32, #tpu.memory_space<vmem>>) attributes {dimension_semantics = [#tpu.dimension_semantics<parallel>, #tpu.dimension_semantics<arbitrary>], iteration_bounds = array<i64: 1, 1>, scalar_prefetch = 0 : i64, scratch_operands = 1 : i64, tpu.core_type = #tpu.core_type<tc>, window_params = [{transform_indices = @transform_0, window_bounds = array<i64: 2, 4, 256>}, {pipeline_mode = #tpu.pipeline_mode<synchronous>, transform_indices = @transform_1, window_bounds = array<i64: 4, 128>}, {pipeline_mode = #tpu.pipeline_mode<synchronous>, transform_indices = @transform_2, window_bounds = array<i64: 1, 128>}, {transform_indices = @transform_3, window_bounds = array<i64: 2, 128>}]} {
    %c0_i32 = arith.constant 0 : i32
    %0 = arith.cmpi eq, %arg1, %c0_i32 : i32
    %1 = arith.extui %0 : i1 to i32
    %c0_i32_0 = arith.constant 0 : i32
    %2 = arith.cmpi ne, %1, %c0_i32_0 : i32
    scf.if %2 {
      %cst_9 = arith.constant 0.000000e+00 : f32
      %11 = vector.broadcast %cst_9 : f32 to vector<2x4xf32>
      %c0_10 = arith.constant 0 : index
      %c0_11 = arith.constant 0 : index
      %12 = vector.load %arg6[%c0_10, %c0_11] : memref<2x4xf32, #tpu.memory_space<vmem>>, vector<2x4xf32>
      tpu.vector_store %arg6[%c0_10, %c0_11], %11 {strides = array<i32>} : memref<2x4xf32, #tpu.memory_space<vmem>>, vector<2x4xf32>,
    } else {
    }
    %c0 = arith.constant 0 : index
    %c0_1 = arith.constant 0 : index
    %c0_2 = arith.constant 0 : index
    %3 = vector.load %arg2[%c0, %c0_1, %c0_2] : memref<2x4x256xf32, #tpu.memory_space<vmem>>, vector<2x4x256xf32>
    %c0_3 = arith.constant 0 : index
    %c0_4 = arith.constant 0 : index
    %4 = vector.load %arg6[%c0_3, %c0_4] : memref<2x4xf32, #tpu.memory_space<vmem>>, vector<2x4xf32>
    %cst = arith.constant dense<0.000000e+00> : vector<2x4xf32>
    %5 = vector.multi_reduction <add>, %3, %cst [2] : vector<2x4x256xf32> to vector<2x4xf32>
    %6 = arith.addf %4, %5 : vector<2x4xf32>
    %c0_5 = arith.constant 0 : index
    %c0_6 = arith.constant 0 : index
    %7 = vector.load %arg6[%c0_5, %c0_6] : memref<2x4xf32, #tpu.memory_space<vmem>>, vector<2x4xf32>
    tpu.vector_store %arg6[%c0_5, %c0_6], %6 {strides = array<i32>} : memref<2x4xf32, #tpu.memory_space<vmem>>, vector<2x4xf32>,
    %c0_i32_7 = arith.constant 0 : i32
    %8 = arith.cmpi eq, %arg1, %c0_i32_7 : i32
    %9 = arith.extui %8 : i1 to i32
    %c0_i32_8 = arith.constant 0 : i32
    %10 = arith.cmpi ne, %9, %c0_i32_8 : i32
    scf.if %10 {
      %c0_9 = arith.constant 0 : index
      %c0_10 = arith.constant 0 : index
      %11 = vector.load %arg6[%c0_9, %c0_10] : memref<2x4xf32, #tpu.memory_space<vmem>>, vector<2x4xf32>
      %cst_11 = arith.constant 3.906250e-03 : f32
      %12 = vector.broadcast %cst_11 : f32 to vector<2x4xf32>
      %13 = arith.mulf %11, %12 : vector<2x4xf32>
      %c0_12 = arith.constant 0 : index
      %c0_13 = arith.constant 0 : index
      %14 = vector.load %arg3[%c0_12, %c0_13] : memref<4x128xf32, #tpu.memory_space<vmem>>, vector<4x128xf32>
      %cst_14 = arith.constant dense<0.000000e+00> : vector<2x128xf32>
      %15 = tpu.matmul %13, %14, %cst_14 {dimension_numbers = #tpu.dot_dimension_numbers<[1], [0], [0], [1], [0, 0, 1, 1], [], []>} : vector<2x4xf32>, vector<4x128xf32>, vector<2x128xf32> -> vector<2x128xf32>
      %c0_15 = arith.constant 0 : index
      %c0_16 = arith.constant 0 : index
      %16 = vector.load %arg4[%c0_15, %c0_16] : memref<1x128xf32, #tpu.memory_space<vmem>>, vector<1x128xf32>
      %17 = vector.broadcast %16 : vector<1x128xf32> to vector<2x128xf32>
      %18 = arith.addf %15, %17 : vector<2x128xf32>
      %cst_17 = arith.constant 0.000000e+00 : f32
      %19 = vector.broadcast %cst_17 : f32 to vector<2x128xf32>
      %20 = arith.cmpf ogt, %18, %19 : vector<2x128xf32>
      %21 = arith.extui %20 : vector<2x128xi1> to vector<2x128xi32>
      %22 = arith.sitofp %21 : vector<2x128xi32> to vector<2x128xf32>
      %c0_18 = arith.constant 0 : index
      %c0_19 = arith.constant 0 : index
      %23 = vector.load %arg5[%c0_18, %c0_19] : memref<2x128xf32, #tpu.memory_space<vmem>>, vector<2x128xf32>
      tpu.vector_store %arg5[%c0_18, %c0_19], %22 {strides = array<i32>} : memref<2x128xf32, #tpu.memory_space<vmem>>, vector<2x128xf32>,
    } else {
    }
    return
  }
  func.func @transform_0(%arg0: i32, %arg1: i32) -> (i32, i32, i32) {
    %c0_i32 = arith.constant 0 : i32
    %c0_i32_0 = arith.constant 0 : i32
    return %arg0, %c0_i32, %arg1 : i32, i32, i32
  }
  func.func @transform_1(%arg0: i32, %arg1: i32) -> (i32, i32) {
    %c0_i32 = arith.constant 0 : i32
    %c0_i32_0 = arith.constant 0 : i32
    %c0_i32_1 = arith.constant 0 : i32
    return %c0_i32, %c0_i32_0 : i32, i32
  }
  func.func @transform_2(%arg0: i32, %arg1: i32) -> (i32, i32) {
    %c0_i32 = arith.constant 0 : i32
    %c0_i32_0 = arith.constant 0 : i32
    %c0_i32_1 = arith.constant 0 : i32
    return %c0_i32, %c0_i32_0 : i32, i32
  }
  func.func @transform_3(%arg0: i32, %arg1: i32) -> (i32, i32) {
    %c0_i32 = arith.constant 0 : i32
    %c0_i32_0 = arith.constant 0 : i32
    return %arg0, %c0_i32 : i32, i32
  }
}

</mosaic_0001>

<llo_original>
// kernel: tpu_custom_call.1
$region0: #{tpu_custom_call.1}
  #allocation0 [shape = 'u32[]', space=smem, size = 0x4, offset = 0x4, fixed_abs, tag = 'smem constant byte address 0x4 - core index']
  #allocation1 [shape = 'u32[144,128]{1,0:T(1,128)}', space=vmem, size = 0x12000, scoped, tag = 'internal scratch']
  #allocation2 [shape = 'f32[2,4]{1,0:T(2,128)}', space=vmem, size = 0x400, scoped, tag = 'scratch operand']
  %s0 = inlined_call_operand.hbm [shape: f32[2,4,256], index: 0, kind: input, shape index: {}]
  %s1 = inlined_call_operand.hbm [shape: f32[4,128], index: 1, kind: input, shape index: {}]
  %s2 = inlined_call_operand.vmem [shape: f32[1,128], index: 2, kind: input, shape index: {}]
  %s3 = inlined_call_operand.hbm [shape: f32[2,128], index: 3, kind: output, shape index: {}]
  %s4 = sld [smem:[#allocation0]]
  $region38: #{tpu_custom_call.1} parent=0
    _
  %s6 = ssub.s32 1, %s4
  %s7 = scalar_select 0, %s6, %s4
  $region1: #{tpu_custom_call.1} parent=0
    #allocation3 [shape = 'u8[8192]{0}', space=vmem, size = 0x2000, scoped, tag = 'input window, operand 0, single buffered']
    #allocation4 [shape = 's32[1]{0}', space=sflag, size = 0x4, scoped, tag = 'scoped memory for tpu_custom_call.1']
    #allocation5 [shape = 's32[1]{0}', space=sflag, size = 0x4, scoped, tag = 'scoped memory for tpu_custom_call.1']
    #allocation6 [shape = 'u8[2048]{0}', space=vmem, size = 0x800, scoped, tag = 'input window, operand 1, single buffered']
    #allocation7 [shape = 's32[1]{0}', space=sflag, size = 0x4, scoped, tag = 'scoped memory for tpu_custom_call.1']
    #allocation8 [shape = 'u8[1024]{0}', space=vmem, size = 0x400, scoped, tag = 'output window, operand 0, single buffered']
    %8 = vsyncpa [#allocation4], 0
    %9 = vsyncpa [#allocation7], 0
    %10 = vsyncpa [#allocation5], 0
    // Predicated region
    $region2: #{tpu_custom_call.1} parent=1 // pred_check
      _
    $region3: #{tpu_custom_call.1} parent=1 // pred_check_branch
      %12 = sbr.rel (0) target = $region5
    $region4: #{tpu_custom_call.1} parent=1 // pred_region
      %s14 = ssub.s32 256, 256
      %15 = vsyncadd [#allocation4], %s14
      %s16 = sshll.u32 [#allocation3], 4
      %s17 = int_to_ptr.vmem [resolvable:$true] %s16
      %22 = dma.hbm_to_vmem [thread:$0]  %s0, 256, %s17, [#allocation4], 128, 128, 8
    $region5: #{tpu_custom_call.1} parent=1 // pred_fallthru
      _
    // Predicated region
    $region6: #{tpu_custom_call.1} parent=1 // pred_check
      _
    $region7: #{tpu_custom_call.1} parent=1 // pred_check_branch
      %24 = sbr.rel (0) target = $region9
    $region8: #{tpu_custom_call.1} parent=1 // pred_region
      %s26 = ssub.s32 64, 64
      %27 = vsyncadd [#allocation7], %s26
      %s29 = sshll.u32 [#allocation6], 4
      %s30 = int_to_ptr.vmem [resolvable:$true] %s29
      %32 = dma.hbm_to_vmem [thread:$0]  %s1, 64, %s30, [#allocation7]
    $region9: #{tpu_custom_call.1} parent=1 // pred_fallthru
      _
    // Predicated region
    $region10: #{tpu_custom_call.1} parent=1 // pred_check
      _
    $region11: #{tpu_custom_call.1} parent=1 // pred_check_branch
      %34 = sbr.rel (0) target = $region13
    $region12: #{tpu_custom_call.1} parent=1 // pred_region
      _
    $region13: #{tpu_custom_call.1} parent=1 // pred_fallthru
      _
    // Predicated region
    $region14: #{tpu_custom_call.1} parent=1 // pred_check
      _
    $region15: #{tpu_custom_call.1} parent=1 // pred_check_branch
      %36 = sbr.rel (0) target = $region17
    $region16: #{tpu_custom_call.1} parent=1 // pred_region
      %37 = dma.done [#allocation4], 256
    $region17: #{tpu_custom_call.1} parent=1 // pred_fallthru
      _
    // Predicated region
    $region18: #{tpu_custom_call.1} parent=1 // pred_check
      _
    $region19: #{tpu_custom_call.1} parent=1 // pred_check_branch
      %39 = sbr.rel (0) target = $region21
    $region20: #{tpu_custom_call.1} parent=1 // pred_region
      %40 = dma.done [#allocation7], 64
    $region21: #{tpu_custom_call.1} parent=1 // pred_fallthru
      _
    %p41 = scmp.eq.s32.totalorder 0, 0
    // Predicated region
    $region22: #{tpu_custom_call.1} parent=1 // pred_check
      %p42 = pneg %p41
    $region23: #{tpu_custom_call.1} parent=1 // pred_check_branch
      %44 = sbr.rel (%p42) target = $region25
    $region24: #{tpu_custom_call.1} parent=1 // pred_region
      %vm45 = vcmask 25600
      %46 = vst.msk [vmem:[#allocation2] sm:$0x3] %vm45, 0.0
    $region25: #{tpu_custom_call.1} parent=1 // pred_fallthru
      _
    %v47 = vld [vmem:[#allocation3] sm:$0xff]
    %v48 = vld [vmem:[#allocation3 + $0x8] sm:$0xff]
    %v49 = vld [vmem:[#allocation2] sm:$0x3]
    %v52 = vcombine.high %v47, %v47
    %v53 = vcombine.high %v48, %v48
    %vm56 = vcmask 1043456
    %v57 = vsel %vm56, %v47, 0.0
    %v58 = vsel %vm56, %v52, 0.0
    %v59 = vadd.f32 %v57, %v58
    %60 = vadd.xlane.f32.xlu0 %v59
    %v61 = vpop.xlane.xlu0 %60
    %v62 = vsel %vm56, %v48, 0.0
    %v63 = vsel %vm56, %v53, 0.0
    %v64 = vadd.f32 %v62, %v63
    %65 = vadd.xlane.f32.xlu0 %v64
    %v66 = vpop.xlane.xlu0 %65
    %v69 = vlaneseq
    %v70 = vand.u32 %v69, 127
    %v71 = vlaneseq
    %v72 = vshrl.u32 %v71, 7
    %v73 = vsub.s32 %v70, %v72
    %v74 = vrot.slane %v61, %v73
    %v75 = vlaneseq
    %v76 = vshrl.u32 %v75, 7
    %v77 = vsub.s32 %v70, %v76
    %v78 = vrot.slane %v66, %v77
    %vm79 = vcmask 1041409
    %v80 = vsel %vm79, %v78, %v74
    %v82 = vadd.f32 %v49, %v80
    %vm83 = vcmask 25600
    %84 = vst.msk [vmem:[#allocation2] sm:$0x3] %vm83, %v82
    // Predicated region
    $region26: #{tpu_custom_call.1} parent=1 // pred_check
      %p85 = pneg %p41
    $region27: #{tpu_custom_call.1} parent=1 // pred_check_branch
      %87 = sbr.rel (%p85) target = $region29
    $region28: #{tpu_custom_call.1} parent=1 // pred_region
      %v88 = vld [vmem:[#allocation2] sm:$0x3]
      %v89 = vmul.f32 %v88, 0.00390625
      %v90 = vld [vmem:[#allocation6] sm:$0xf]
      %v91 = vld [vmem:[%s2] sm:$0x1]
      %v93 = vlaneseq
      %v94 = vshrl.u32 %v93, 7
      %v95 = vsub.s32 0, %v94
      %v96 = vrot.slane %v91, %v95
      %vm98 = vcmask 31744
      %v100 = vsel %vm98, %v89, 0
      %v103 = vsel %vm56, %v90, 0
      %105 = vmatprep.subr.mxu0 0.0
      %106 = vmatpush1.msra.mxu0 %v103
      %107 = vmatprep.subr.mxu0 0.0
      %108 = vmatpush1.msra.mxu0 0.0
      %109 = vmatprep.subr.mxu0 0.0
      %110 = vmatpush1.msra.mxu0 0.0
      %111 = vmatprep.subr.mxu0 0.0
      %112 = vmatpush1.msra.mxu0 0.0
      %113 = vmatprep.subr.mxu0 0.0
      %114 = vmatpush1.msra.mxu0 0.0
      %115 = vmatprep.subr.mxu0 0.0
      %116 = vmatpush1.msra.mxu0 0.0
      %117 = vmatprep.subr.mxu0 0.0
      %118 = vmatpush1.msra.mxu0 0.0
      %119 = vmatprep.subr.mxu0 0.0
      %120 = vmatpush1.msra.mxu0 0.0
      %121 = vmatprep.subr.mxu0 0.0
      %122 = vmatpush1.msra.mxu0 0.0
      %123 = vmatprep.subr.mxu0 0.0
      %124 = vmatpush1.msra.mxu0 0.0
      %125 = vmatprep.subr.mxu0 0.0
      %126 = vmatpush1.msra.mxu0 0.0
      %127 = vmatprep.subr.mxu0 0.0
      %128 = vmatpush1.msra.mxu0 0.0
      %129 = vmatprep.subr.mxu0 0.0
      %130 = vmatpush1.msra.mxu0 0.0
      %131 = vmatprep.subr.mxu0 0.0
      %132 = vmatpush1.msra.mxu0 0.0
      %133 = vmatprep.subr.mxu0 0.0
      %134 = vmatpush1.msra.mxu0 0.0
      %135 = vmatprep.subr.mxu0 0.0
      %136 = vmatpush1.msra.mxu0 0.0
      %137 = vmatprep.subr.mxu0 0.0
      %138 = vmatpush1.msra.mxu0 0.0
      %139 = vmatprep.subr.mxu0 0.0
      %140 = vmatpush1.msra.mxu0 0.0
      %141 = vmatprep.subr.mxu0 0.0
      %142 = vmatpush1.msra.mxu0 0.0
      %143 = vmatprep.subr.mxu0 0.0
      %144 = vmatpush1.msra.mxu0 0.0
      %145 = vmatprep.subr.mxu0 0.0
      %146 = vmatpush1.msra.mxu0 0.0
      %147 = vmatprep.subr.mxu0 0.0
      %148 = vmatpush1.msra.mxu0 0.0
      %149 = vmatprep.subr.mxu0 0.0
      %150 = vmatpush1.msra.mxu0 0.0
      %151 = vmatprep.subr.mxu0 0.0
      %152 = vmatpush1.msra.mxu0 0.0
      %153 = vmatprep.subr.mxu0 0.0
      %154 = vmatpush1.msra.mxu0 0.0
      %155 = vmatprep.subr.mxu0 0.0
      %156 = vmatpush1.msra.mxu0 0.0
      %157 = vmatprep.subr.mxu0 0.0
      %158 = vmatpush1.msra.mxu0 0.0
      %159 = vmatprep.subr.mxu0 0.0
      %160 = vmatpush1.msra.mxu0 0.0
      %161 = vmatprep.subr.mxu0 0.0
      %162 = vmatpush1.msra.mxu0 0.0
      %163 = vmatprep.subr.mxu0 0.0
      %164 = vmatpush1.msra.mxu0 0.0
      %165 = vmatprep.subr.mxu0 0.0
      %166 = vmatpush1.msra.mxu0 0.0
      %167 = vmatprep.subr.mxu0 0.0
      %168 = vmatpush1.msra.mxu0 0.0
      %169 = vmatprep.mubr.f32.mxu0 0.0
      %170 = vmatmul.mubr.f32.gmra.mrb[0].mxu0 %v100
      %v171 = vpop.f32.mrb[0].mxu0
      %v172 = vadd.f32 %v96, %v171
      %v173 = vpop.f32.mrb[0].mxu0
      %174 = vdwg.mxu0
      %vm175 = vcmp.gt.f32.partialorder %v172, 0.0
      %v176 = vsel %vm175, 1, 0
      %v177 = vcvt.s32.f32 %v176
      %178 = vst [vmem:[#allocation8] sm:$0x3] %v177
    $region29: #{tpu_custom_call.1} parent=1 // pred_fallthru
      _
    // Predicated region
    $region30: #{tpu_custom_call.1} parent=1 // pred_check
      _
    $region31: #{tpu_custom_call.1} parent=1 // pred_check_branch
      %180 = sbr.rel (0) target = $region33
    $region32: #{tpu_custom_call.1} parent=1 // pred_region
      %s182 = ssub.s32 32, 32
      %183 = vsyncadd [#allocation5], %s182
      %s185 = sshll.u32 [#allocation8], 4
      %s186 = int_to_ptr.vmem [resolvable:$true] %s185
      %188 = dma.vmem_to_hbm [thread:$0]  %s186, 32, %s3, [#allocation5]
    $region33: #{tpu_custom_call.1} parent=1 // pred_fallthru
      _
    // Predicated region
    $region34: #{tpu_custom_call.1} parent=1 // pred_check
      _
    $region35: #{tpu_custom_call.1} parent=1 // pred_check_branch
      %190 = sbr.rel (0) target = $region37
    $region36: #{tpu_custom_call.1} parent=1 // pred_region
      %191 = dma.done [#allocation5], 32
    $region37: #{tpu_custom_call.1} parent=1 // pred_fallthru
      _
    %192 = vsyncpa [#allocation4], 1
    %193 = vsyncpa [#allocation7], 1
    %194 = vsyncpa [#allocation5], 1

</llo_original>
